<compile_context>
chip_gen: v7x
topology: tpu7x:2x2x1
jax: 0.10.0
libtpu: 0.0.40
codegen_flags: <defaults>
</compile_context>

<pallas_src>
import functools
import math

import jax
import jax.numpy as jnp
from jax import lax
from jax.experimental import pallas as pl
from jax.experimental.pallas import tpu as pltpu


def _get_slopes(heads):
    """Identical to AlibiPositionalBias._get_slopes (deterministic)."""

    def get_slopes_power_of_2(n):
        start = 2 ** (-2 ** (-(math.log2(n) - 3)))
        ratio = start
        return [start * ratio ** k for k in range(n)]

    if math.log2(heads).is_integer():
        return get_slopes_power_of_2(heads)
    closest_power_of_2 = 2 ** math.floor(math.log2(heads))
    return (
        get_slopes_power_of_2(closest_power_of_2)
        + get_slopes_power_of_2(2 * closest_power_of_2)[0::2][: heads - closest_power_of_2]
    )


def _round_up(x, m):
    return (x + m - 1) // m * m


def _alibi_kernel(slopes_ref, out_ref, dist_ref, *, diag):
    # slopes_ref: (total_heads,) f32 in SMEM (scalar prefetch).
    # out_ref:    (1, ti, tj) output tile in VMEM.
    # dist_ref:   (ti, tj) f32 VMEM scratch holding |distance| for the current tile,
    #             computed once at h == 0 and reused for every head (heads innermost).
    bi = pl.program_id(0)
    bj = pl.program_id(1)
    h = pl.program_id(2)
    ti = out_ref.shape[1]
    tj = out_ref.shape[2]

    @pl.when(h == 0)
    def _():
        row0 = bi * ti  # global query-row offset of this tile
        col0 = bj * tj  # global key-col  offset of this tile
        rows = lax.broadcasted_iota(jnp.int32, (ti, tj), 0)
        cols = lax.broadcasted_iota(jnp.int32, (ti, tj), 1)
        # global distance: (col0 + c) - (row0 + r) - (j - i)
        shift = col0 - row0 - diag
        dist_ref[...] = jnp.abs((cols + shift) - rows).astype(jnp.float32)

    slope = slopes_ref[h]
    # 0.0 - dist*slope: matches PyTorch bitwise (+0.0 on padded heads / zero distance).
    out_ref[0] = (0.0 - dist_ref[...] * slope).astype(out_ref.dtype)


def alibi_positional_bias(i, j, heads, total_heads, out_dtype=jnp.float32):
    """Returns bias of shape (total_heads, i, j) (matches module.forward).

    out_dtype=jnp.bfloat16 halves HBM write traffic for bf16 attention consumers;
    float32 (default) matches the PyTorch module exactly.
    """
    slopes = jnp.asarray(_get_slopes(heads), dtype=jnp.float32)
    # Zero slopes for the "unalibied" heads -> reproduces pad_at_dim(..., value=0).
    slopes_padded = jnp.zeros((total_heads,), dtype=jnp.float32).at[:heads].set(slopes)

    elem = jnp.dtype(out_dtype).itemsize

    # Per-tile working set budget: 2 double-buffered output tiles (elem bytes each)
    # plus the f32 dist scratch (4 bytes) -> cap total at ~24 MiB so it fits a 32 MiB
    # scoped-VMEM limit on every generation (v7x has only 64 MiB physical VMEM).
    work_budget = 24 * 1024 * 1024
    max_elems = max(8 * 128, work_budget // (2 * elem + 4))

    # Tile units / caps: multiples of (8, 128) unless the array dim itself is smaller,
    # in which case the full dim is used (also legal per the (8,128) rule).
    if i < 8:
        ti_unit, ti_cap = i, i
    else:
        ti_unit, ti_cap = 8, _round_up(i, 8)
    if j < 128:
        tj_unit, tj_cap = j, j
    else:
        tj_unit, tj_cap = 128, _round_up(j, 128)

    # Grow tj first (lane-dense streaming, no 2048 cap), then ti, under the budget.
    tj = min(tj_cap, max(tj_unit, (max_elems // max(ti_unit, 1)) // tj_unit * tj_unit))
    ti = min(ti_cap, max(ti_unit, (max_elems // max(tj, 1)) // ti_unit * ti_unit))

    grid = (pl.cdiv(i, ti), pl.cdiv(j, tj), total_heads)

    kernel = functools.partial(_alibi_kernel, diag=j - i)

    out = pl.pallas_call(
        kernel,
        out_shape=jax.ShapeDtypeStruct((total_heads, i, j), out_dtype),
        grid_spec=pltpu.PrefetchScalarGridSpec(
            num_scalar_prefetch=1,
            grid=grid,
            in_specs=[],
            out_specs=pl.BlockSpec((1, ti, tj), lambda bi, bj, h, slopes: (h, bi, bj)),
            scratch_shapes=[pltpu.VMEM((ti, tj), jnp.float32)],
        ),
        compiler_params=pltpu.CompilerParams(
            # dist scratch is carried across the (innermost) heads axis -> arbitrary;
            # spatial tiles are independent -> parallel (megacore sharding on v7x).
            dimension_semantics=("parallel", "parallel", "arbitrary"),
            vmem_limit_bytes=32 * 1024 * 1024,
        ),
        cost_estimate=pl.CostEstimate(
            flops=2 * total_heads * i * j + 5 * i * j,
            transcendentals=0,
            bytes_accessed=elem * total_heads * i * j + 4 * total_heads,
        ),
    )(slopes_padded)

    return out


def _reference(i, j, heads, total_heads):
    """Pure-JAX reference mirroring the PyTorch forward."""
    slopes = jnp.asarray(_get_slopes(heads), dtype=jnp.float32).reshape(heads, 1, 1)
    i_arange = jnp.arange(j - i, j)
    j_arange = jnp.arange(j)
    bias = -jnp.abs(j_arange[None, None, :] - i_arange[None, :, None]).astype(jnp.float32)
    bias = bias * slopes
    pad = total_heads - heads
    return jnp.pad(bias, ((0, pad), (0, 0), (0, 0)))


if __name__ == "__main__":
    # PRNGKey(0) only to exercise determinism plumbing; forward takes no random
    # inputs (i, j are static ints, slopes are deterministic).
    _ = jax.random.PRNGKey(0)

    # Case 1: heads=4 alibi'd, total_heads=8, query length i=8, key length j=16
    # (j < 128 -> full-dim column block).
    heads, total_heads = 4, 8
    i, j = 8, 16
    out = jax.block_until_ready(alibi_positional_bias(i, j, heads, total_heads))
    ref = _reference(i, j, heads, total_heads)
    assert out.shape == (total_heads, i, j), out.shape
    assert out.dtype == jnp.float32
    assert jnp.allclose(out, ref, atol=1e-6), "mismatch vs reference (case 1)"

    # Case 2: non-aligned i/j (i=12, j=200) -> exercises the ragged boundary block's
    # masked writeback path (no wrapper pad/slice any more).
    out2 = jax.block_until_ready(alibi_positional_bias(12, 200, 3, 4))
    ref2 = _reference(12, 200, 3, 4)
    assert out2.shape == (4, 12, 200), out2.shape
    assert jnp.allclose(out2, ref2, atol=1e-6), "mismatch vs reference (case 2)"

    # Case 3: bf16 output path (for bf16 attention consumers) — tolerance check only.
    out3 = jax.block_until_ready(
        alibi_positional_bias(12, 200, 3, 4, out_dtype=jnp.bfloat16)
    )
    assert out3.dtype == jnp.bfloat16
    assert jnp.allclose(out3.astype(jnp.float32), ref2, rtol=2e-2, atol=2e-2), (
        "mismatch vs reference (case 3, bf16)"
    )

    print("KERNEL_OK")
</pallas_src>

<mosaic_0001>
module attributes {stable_mosaic.version = 11 : i64} {
  func.func @_alibi_kernel(%arg0: i32, %arg1: i32, %arg2: i32, %arg3: memref<8xf32, #tpu.memory_space<smem>>, %arg4: memref<1x8x16xf32, #tpu.memory_space<vmem>>, %arg5: memref<8x16xf32, #tpu.memory_space<vmem>>) attributes {dimension_semantics = [#tpu.dimension_semantics<parallel>, #tpu.dimension_semantics<parallel>, #tpu.dimension_semantics<arbitrary>], iteration_bounds = array<i64: 1, 1, 8>, scalar_prefetch = 1 : i64, scratch_operands = 1 : i64, tpu.core_type = #tpu.core_type<tc>, window_params = [{transform_indices = @transform_0, window_bounds = array<i64: 1, 8, 16>}]} {
    %c0_i32 = arith.constant 0 : i32
    %0 = arith.cmpi eq, %arg2, %c0_i32 : i32
    %1 = arith.extui %0 : i1 to i32
    %c0_i32_0 = arith.constant 0 : i32
    %2 = arith.cmpi ne, %1, %c0_i32_0 : i32
    scf.if %2 {
      %c8_i32 = arith.constant 8 : i32
      %13 = arith.muli %arg0, %c8_i32 : i32
      %c16_i32 = arith.constant 16 : i32
      %14 = arith.muli %arg1, %c16_i32 : i32
      %15 = tpu.iota {dimensions = array<i32: 0>} : vector<8x16xi32>
      %16 = tpu.iota {dimensions = array<i32: 1>} : vector<8x16xi32>
      %17 = arith.subi %14, %13 : i32
      %c8_i32_5 = arith.constant 8 : i32
      %18 = arith.subi %17, %c8_i32_5 : i32
      %19 = vector.broadcast %18 : i32 to vector<8x16xi32>
      %20 = arith.addi %16, %19 : vector<8x16xi32>
      %21 = arith.subi %20, %15 : vector<8x16xi32>
      %22 = math.absi %21 : vector<8x16xi32>
      %23 = arith.sitofp %22 : vector<8x16xi32> to vector<8x16xf32>
      %c0_6 = arith.constant 0 : index
      %c0_7 = arith.constant 0 : index
      %24 = vector.load %arg5[%c0_6, %c0_7] : memref<8x16xf32, #tpu.memory_space<vmem>>, vector<8x16xf32>
      tpu.vector_store %arg5[%c0_6, %c0_7], %23 {strides = array<i32>} : memref<8x16xf32, #tpu.memory_space<vmem>>, vector<8x16xf32>,
    } else {
    }
    %3 = arith.index_cast %arg2 : i32 to index
    %4 = memref.load %arg3[%3] : memref<8xf32, #tpu.memory_space<smem>>
    %c0 = arith.constant 0 : index
    %c0_1 = arith.constant 0 : index
    %5 = vector.load %arg5[%c0, %c0_1] : memref<8x16xf32, #tpu.memory_space<vmem>>, vector<8x16xf32>
    %6 = vector.broadcast %4 : f32 to vector<8x16xf32>
    %7 = arith.mulf %5, %6 : vector<8x16xf32>
    %cst = arith.constant 0.000000e+00 : f32
    %8 = vector.broadcast %cst : f32 to vector<8x16xf32>
    %9 = arith.subf %8, %7 : vector<8x16xf32>
    %c0_2 = arith.constant 0 : index
    %c0_3 = arith.constant 0 : index
    %c0_4 = arith.constant 0 : index
    %10 = vector.load %arg4[%c0_2, %c0_3, %c0_4] : memref<1x8x16xf32, #tpu.memory_space<vmem>>, vector<1x8x16xf32>
    %11 = vector.shape_cast %10 : vector<1x8x16xf32> to vector<8x16xf32>
    %12 = vector.shape_cast %9 : vector<8x16xf32> to vector<1x8x16xf32>
    tpu.vector_store %arg4[%c0_2, %c0_3, %c0_4], %12 {strides = array<i32>} : memref<1x8x16xf32, #tpu.memory_space<vmem>>, vector<1x8x16xf32>,
    return
  }
  func.func @transform_0(%arg0: i32, %arg1: i32, %arg2: i32, %arg3: memref<8xf32, #tpu.memory_space<smem>>) -> (i32, i32, i32) {
    %c0_i32 = arith.constant 0 : i32
    return %arg2, %arg0, %arg1 : i32, i32, i32
  }
}

</mosaic_0001>

<llo_original>
// kernel: tpu_custom_call.1
$region0: #{tpu_custom_call.1}
  #allocation0 [shape = 'u32[]', space=smem, size = 0x4, offset = 0x4, fixed_abs, tag = 'smem constant byte address 0x4 - core index']
  #allocation1 [shape = 'u32[144,128]{1,0:T(1,128)}', space=vmem, size = 0x12000, scoped, tag = 'internal scratch']
  #allocation2 [shape = 'f32[8,16]{1,0:T(8,128)}', space=vmem, size = 0x1000, scoped, tag = 'scratch operand']
  #allocation3 [shape = 's32[1]{0}', space=sflag, size = 0x4, scoped, tag = 'scoped memory for tpu_custom_call.1']
  #allocation4 [shape = 'u8[512]{0}', space=smem, size = 0x200, scoped, tag = 'prefetched SMEM operand 0']
  %s0 = inlined_call_operand.hbm [shape: f32[8], index: 0, kind: input, shape index: {}]
  %s1 = inlined_call_operand.hbm [shape: f32[8,8,16], index: 1, kind: output, shape index: {}]
  %s2 = sld [smem:[#allocation0]]
  $region29: #{tpu_custom_call.1} parent=0
    _
  %s4 = ssub.s32 1, %s2
  %s5 = scalar_select 0, %s4, %s2
  %7 = dma.hbm_to_smem %s0, 16, [#allocation4], [#allocation3]
  %8 = dma.done [#allocation3], 16
  %9 = sfence
  $region1: #{tpu_custom_call.1} parent=0
    #allocation5 [shape = 'u8[8192]{0}', space=vmem, size = 0x2000, scoped, tag = 'output window, operand 0']
    #allocation6 [shape = 's32[2]{0}', space=sflag, size = 0x8, scoped, tag = 'scoped memory for tpu_custom_call.1']
    %10 = vsyncpa [#allocation6], 0
    %s11 = scalar_lea.sflag [#allocation6], 1
    %12 = vsyncpa %s11, 0
    loop: start=0, step=1, limit=9
    $region2: #{tpu_custom_call.1} parent=1 // loop_pre_header
      _
    $region3: #{tpu_custom_call.1} parent=1 // loop_header
      %s14 = sphi 0, %s18
      %p15 = scmp.ge.s32.totalorder %s14, 9
      %s20 = sphi 0, %s36
      %s21 = sphi 0, %s32
      %s22 = sphi 0, %s28
      %s23 = sphi 0, %s20
      %s24 = sphi 0, %s21
      %s25 = sphi 0, %s22
      %s43 = sphi 0, %s45
      %s46 = sphi 0, %s43
      %s56 = sphi 0, %s46
    $region4: #{tpu_custom_call.1} parent=1 // loop_header_branch
      %17 = sbr.rel (%p15) target = $region8
    $region5: #{tpu_custom_call.1} parent=1 // loop_body
      %s19 = ssub.s32 %s14, 1
      %s26 = sadd.s32 1, %s22
      %p27 = scmp.ge.s32.totalorder %s26, 8
      %s28 = scalar_select %p27, 0, %s26
      %s29 = sadd.s32 1, %s21
      %s30 = scalar_select %p27, %s29, %s21
      %p31 = scmp.ge.s32.totalorder %s30, 1
      %s32 = scalar_select %p31, 0, %s30
      %s33 = sadd.s32 1, %s20
      %s34 = scalar_select %p31, %s33, %s20
      %p35 = scmp.ge.s32.totalorder %s34, 1
      %s36 = scalar_select %p35, 0, %s34
      %s37 = ssub.s32 %s22, %s28
      %s38 = ssub.s32 %s20, %s36
      %s39 = sor.u32 %s37, %s38
      %s40 = ssub.s32 %s21, %s32
      %s41 = sor.u32 %s39, %s40
      %p42 = scmp.eq.s32.totalorder %s41, 0
      %s44 = sadd.s32 %s43, 1
      %s45 = scalar_select %p42, %s43, %s44
      %p47 = pneg %p42
      %p48 = scmp.eq.s32.totalorder %s14, 7
      %p49 = por %p47, %p48
      %p50 = scmp.ne.s32.totalorder %s43, %s46
      %p51 = scmp.eq.s32.totalorder %s14, 0
      %p52 = por %p50, %p51
      %p53 = scmp.ne.s32.totalorder %s43, %s46
      %p54 = scmp.eq.s32.totalorder %s19, 7
      %p55 = por %p53, %p54
      %p57 = scmp.ne.s32.totalorder %s46, %s56
      %p58 = scmp.eq.s32.totalorder %s19, 0
      %p59 = por %p57, %p58
      %p60 = scmp.lt.s32.totalorder %s14, 8
      // Predicated region
      $region9: #{tpu_custom_call.1} parent=5 // pred_check
        %p61 = pneg %p60
      $region10: #{tpu_custom_call.1} parent=5 // pred_check_branch
        %63 = sbr.rel (%p61) target = $region12
      $region11: #{tpu_custom_call.1} parent=5 // pred_region
        %p64 = pneg %p52
        %p65 = pneg %p49
        %s66 = sand.u32 %s43, 1
        %s67 = scalar_lea.sflag [#allocation6], %s66
        %s68 = sand.u32 %s43, 1
        %s69 = smul.addr %s68, 8
        %s70 = scalar_lea.vmem [#allocation5], %s69
        %p71 = scmp.eq.s32.totalorder %s22, 0
        // Predicated region
        $region13: #{tpu_custom_call.1} parent=11 // pred_check
          %p72 = pneg %p71
        $region14: #{tpu_custom_call.1} parent=11 // pred_check_branch
          %74 = sbr.rel (%p72) target = $region16
        $region15: #{tpu_custom_call.1} parent=11 // pred_region
          %s75 = smul.u32 %s20, 8
          %s76 = smul.u32 %s21, 16
          %v77 = vlaneseq
          %v78 = vshrl.u32 %v77, 7
          %v79 = vlaneseq
          %v80 = vand.u32 %v79, 127
          %s81 = ssub.s32 %s76, %s75
          %s82 = ssub.s32 %s81, 8
          %v83 = vstv %s82
          %v84 = vadd.s32 %v80, %v83
          %v85 = vsub.s32 %v84, %v78
          %vm86 = vcmp.lt.s32.totalorder %v85, 0
          %v87 = vsub.s32 0, %v85
          %v88 = vsel %vm86, %v87, %v85
          %v89 = vcvt.s32.f32 %v88
          %vm90 = vcmask 130048
          %91 = vst.msk [vmem:[#allocation2] sm:$0xff] %vm90, %v89
        $region16: #{tpu_custom_call.1} parent=11 // pred_fallthru
          _
        %s92 = sld [smem:[#allocation4 + %s22]]
        %v93 = vld [vmem:[#allocation2] sm:$0xff]
        %v94 = vstv %s92
        %v95 = vmul.f32 %v93, %v94
        %v96 = vsub.f32 0.0, %v95
        %vm97 = vcmask 130048
        %98 = vst.msk [vmem:[%s70] sm:$0xff] %vm97, %v96
        %s99 = sand.u32 %s43, 1
        %s100 = scalar_lea.sflag [#allocation6], %s99
        %s101 = sand.u32 %s43, 1
        %s102 = smul.addr %s101, 8
        %s103 = scalar_lea.vmem [#allocation5], %s102
        // Predicated region
        $region17: #{tpu_custom_call.1} parent=11 // pred_check
          %p104 = pneg %p49
        $region18: #{tpu_custom_call.1} parent=11 // pred_check_branch
          %106 = sbr.rel (%p104) target = $region20
        $region19: #{tpu_custom_call.1} parent=11 // pred_region
          %s108 = ssub.s32 128, 128
          %109 = vsyncadd %s100, %s108
          %s110 = sadd.s32 %s21, %s20
          %s111 = sadd.s32 %s110, %s22
          %s112 = smul.addr %s111, 128
          %s113 = scalar_lea.hbm %s1, %s112
          %s115 = sshll.u32 %s103, 4
          %s116 = int_to_ptr.vmem [resolvable:$true] %s115
          %118 = dma.vmem_to_hbm [thread:$0]  %s116, 128, %s113, %s100
        $region20: #{tpu_custom_call.1} parent=11 // pred_fallthru
          _
      $region12: #{tpu_custom_call.1} parent=5 // pred_fallthru
        _
      %p119 = scmp.le.s32.totalorder 1, %s14
      // Predicated region
      $region21: #{tpu_custom_call.1} parent=5 // pred_check
        %p120 = pneg %p119
      $region22: #{tpu_custom_call.1} parent=5 // pred_check_branch
        %122 = sbr.rel (%p120) target = $region24
      $region23: #{tpu_custom_call.1} parent=5 // pred_region
        %s123 = ssub.s32 %s14, 1
        // Predicated region
        $region25: #{tpu_custom_call.1} parent=23 // pred_check
          %p124 = pneg %p55
        $region26: #{tpu_custom_call.1} parent=23 // pred_check_branch
          %126 = sbr.rel (%p124) target = $region28
        $region27: #{tpu_custom_call.1} parent=23 // pred_region
          %s127 = sand.u32 %s46, 1
          %s128 = scalar_lea.sflag [#allocation6], %s127
          %s129 = sand.u32 %s46, 1
          %s130 = smul.addr %s129, 8
          %s131 = scalar_lea.vmem [#allocation5], %s130
          %132 = dma.done %s128, 128
        $region28: #{tpu_custom_call.1} parent=23 // pred_fallthru
          _
      $region24: #{tpu_custom_call.1} parent=5 // pred_fallthru
        _
    $region6: #{tpu_custom_call.1} parent=1 // loop_footer
      %s18 = sadd.s32 1, %s14
    $region7: #{tpu_custom_call.1} parent=1 // loop_footer_branch
      %13 = sbr.rel target = $region3
    $region8: #{tpu_custom_call.1} parent=1 // loop_exit
      _
    %133 = vsyncpa [#allocation6], 1
    %s134 = scalar_lea.sflag [#allocation6], 1
    %135 = vsyncpa %s134, 1

</llo_original>
